<compile_context>
chip_gen: v5e
topology: v5e:2x2
jax: 0.10.0
libtpu: 0.0.40
codegen_flags: <defaults>
</compile_context>

<pallas_src>
import functools

import jax
import jax.numpy as jnp
from jax.experimental import pallas as pl
from jax.experimental.pallas import tpu as pltpu


# ---------------------------------------------------------------------------
# Helpers
# ---------------------------------------------------------------------------

def _round_up(v, m):
    return (v + m - 1) // m * m


def _cdiv(a, b):
    return (a + b - 1) // b


def _shrink_tile(t):
    """Roughly halve a 128-aligned tile, staying 128-aligned and >= 128."""
    return max(128, _round_up(t // 2, 128))


def _num_tensorcores():
    """Heuristic: v7x exposes 2 TensorCores per device; v5e/v6e expose 1."""
    try:
        kind = jax.devices()[0].device_kind.lower()
    except Exception:
        return 1
    return 2 if "v7" in kind else 1


_VMEM_BUDGET = 40 << 20        # tile-selection budget (blocks x2 + scratch)
_VMEM_LIMIT_CAP = 48 << 20     # safe on v7x (64 MiB physical) and v5e/v6e
_VMEM_LIMIT_FLOOR = 32 << 20


def _train_footprint(tm, tk, tn, w_isz, x_isz, o_isz):
    """Double-buffered VMEM footprint of the training kernel (bytes)."""
    blocks = (tm * tk * x_isz            # x tile
              + tk * x_isz               # f(eps_in)
              + 2 * tk * tn * w_isz      # mu_wt + sigma_wt tiles
              + 2 * tn * 4               # effective bias + f(eps_out)
              + tm * tn * o_isz)         # output tile
    return 2 * blocks + 2 * tm * tn * 4  # 2x buffering + two f32 accumulators


# ---------------------------------------------------------------------------
# Kernels
# ---------------------------------------------------------------------------

def _noisy_linear_kernel(x_ref, f_in_ref, mu_wt_ref, sig_wt_ref, bias_ref,
                         f_out_ref, o_ref, acc_mu_ref, acc_sig_ref):
    """Training: y = x @ mu_wt + ((x * f_in) @ sig_wt) * f_out + bias.

    The noisy weight is never built; both matmuls hit the MXU and accumulate
    over the k (in_features) axis in f32.  f_out is applied once, in the
    k == last epilogue, not every k step.
    """
    k = pl.program_id(2)

    @pl.when(k == 0)
    def _():
        acc_mu_ref[...] = jnp.zeros_like(acc_mu_ref)
        acc_sig_ref[...] = jnp.zeros_like(acc_sig_ref)

    x = x_ref[...]                                   # (tm, tk)
    xn = x * f_in_ref[...]                           # (tm, tk) * (1, tk)
    acc_mu_ref[...] += jnp.dot(x, mu_wt_ref[...],
                               preferred_element_type=jnp.float32)
    acc_sig_ref[...] += jnp.dot(xn, sig_wt_ref[...],
                                preferred_element_type=jnp.float32)

    @pl.when(k == pl.num_programs(2) - 1)
    def _():
        o_ref[...] = (acc_mu_ref[...]
                      + acc_sig_ref[...] * f_out_ref[...]
                      + bias_ref[...]).astype(o_ref.dtype)


def _linear_kernel(x_ref, mu_wt_ref, bias_ref, o_ref, acc_ref):
    """Eval: y = x @ mu_wt + mu_bias (sigma / eps never touched)."""
    k = pl.program_id(2)

    @pl.when(k == 0)
    def _():
        acc_ref[...] = jnp.zeros_like(acc_ref)

    acc_ref[...] += jnp.dot(x_ref[...], mu_wt_ref[...],
                            preferred_element_type=jnp.float32)

    @pl.when(k == pl.num_programs(2) - 1)
    def _():
        o_ref[...] = (acc_ref[...] + bias_ref[...]).astype(o_ref.dtype)


# ---------------------------------------------------------------------------
# Parameter init / one-time preparation (mirrors NoisyNetLayer)
# ---------------------------------------------------------------------------

def init_noisy_net_params(key, in_features, out_features, sigma=0.5):
    """parameter_initialization(): PyTorch (out, in) layout, uniform mu, const sigma."""
    bound = in_features ** (-0.5)
    k_mu_w, k_mu_b = jax.random.split(key)
    return dict(
        mu_weight=jax.random.uniform(k_mu_w, (out_features, in_features),
                                     jnp.float32, -bound, bound),
        mu_bias=jax.random.uniform(k_mu_b, (out_features,), jnp.float32,
                                   -bound, bound),
        sigma_weight=jnp.full((out_features, in_features), sigma * bound,
                              jnp.float32),
        sigma_bias=jnp.full((out_features,), sigma * bound, jnp.float32),
    )


def sample_noise(key, in_features, out_features):
    """sample_noise(): raw N(0,1) draws; f(x)=sgn(x)sqrt(|x|) applied in forward."""
    k_in, k_out = jax.random.split(key)
    return (jax.random.normal(k_in, (in_features,), jnp.float32),
            jax.random.normal(k_out, (out_features,), jnp.float32))


def prepare_params(raw, compute_dtype=jnp.float32, num_tc=None):
    """One-time layout work (NOT per forward): transpose to (in, out), pad to
    tile-aligned shapes, cast weights to the compute dtype, pick tk/tn."""
    if num_tc is None:
        num_tc = _num_tensorcores()
    N, K = raw["mu_weight"].shape
    w_isz = jnp.dtype(compute_dtype).itemsize

    # Dtype-aware tile caps, shrunk until the (worst-case tm=256) training
    # footprint fits the VMEM budget.
    cap = 1024 if w_isz >= 4 else 2048
    tk = min(_round_up(K, 128), cap)
    tn = min(_round_up(N, 128), cap)
    while _train_footprint(256, tk, tn, w_isz, w_isz, 4) > _VMEM_BUDGET:
        if tn >= tk:
            t_new = _shrink_tile(tn)
            if t_new == tn:
                break
            tn = t_new
        else:
            t_new = _shrink_tile(tk)
            if t_new == tk:
                break
            tk = t_new

    # v7x (2 TensorCores): make the parallel j axis split across cores when
    # the feature dim allows it.  Irrelevant (skipped) on v5e/v6e.
    if num_tc >= 2:
        while tn > 128 and _cdiv(N, tn) < 2:
            tn = _shrink_tile(tn)

    Kp, Np = _round_up(K, tk), _round_up(N, tn)

    def pad2(a, r, c):
        if a.shape == (r, c):
            return a
        return jnp.pad(a, ((0, r - a.shape[0]), (0, c - a.shape[1])))

    mu_wt = pad2(raw["mu_weight"].T, Kp, Np).astype(compute_dtype)
    sig_wt = pad2(raw["sigma_weight"].T, Kp, Np).astype(compute_dtype)
    mu_b = pad2(raw["mu_bias"].reshape(1, N), 1, Np).astype(jnp.float32)
    sig_b = pad2(raw["sigma_bias"].reshape(1, N), 1, Np).astype(jnp.float32)

    return dict(mu_wt=mu_wt, sig_wt=sig_wt, mu_bias=mu_b, sigma_bias=sig_b,
                geom=(K, N, tk, tn))


# ---------------------------------------------------------------------------
# Forward
# ---------------------------------------------------------------------------

@functools.partial(jax.jit, static_argnames=("geom", "training"))
def _forward_impl(x, mu_wt, sig_wt, mu_bias, sigma_bias, eps_input, eps_output,
                  *, geom, training):
    K, N, tk, tn = geom
    B = x.shape[0]
    Kp, Np = mu_wt.shape
    out_dtype = x.dtype
    cd = mu_wt.dtype                       # compute dtype (from prepared weights)

    tm = min(_round_up(B, 8), 256)
    Bp = _round_up(B, tm)
    grid = (Bp // tm, Np // tn, Kp // tk)

    # Per-call work is limited to x (and the tiny eps vectors): pad + cast.
    # NOTE(v5e): bf16 compute also casts x / f_in to bf16; the elementwise
    # x * f_in then lacks a native bf16 VALU path there — keep f32 compute on
    # v5e if that cost ever surfaces from under the HBM stalls.
    xp = x
    if (Bp, Kp) != (B, K):
        xp = jnp.pad(xp, ((0, Bp - B), (0, Kp - K)))
    xp = xp.astype(cd)

    w_isz = jnp.dtype(cd).itemsize
    o_isz = jnp.dtype(out_dtype).itemsize
    footprint = _train_footprint(tm, tk, tn, w_isz, w_isz, o_isz)
    vmem_limit = int(min(_VMEM_LIMIT_CAP,
                         max(_VMEM_LIMIT_FLOOR, footprint + (8 << 20))))
    cparams = pltpu.CompilerParams(
        dimension_semantics=("parallel", "parallel", "arbitrary"),
        vmem_limit_bytes=vmem_limit)

    if training:
        # f(eps) = sign(eps) * sqrt(|eps|)  (factorized-noise transform)
        f_in = jnp.sign(eps_input) * jnp.sqrt(jnp.abs(eps_input))
        f_out = jnp.sign(eps_output) * jnp.sqrt(jnp.abs(eps_output))
        f_in2 = jnp.pad(f_in.reshape(1, K),
                        ((0, 0), (0, Kp - K))).astype(cd)
        f_out2 = jnp.pad(f_out.reshape(1, N),
                         ((0, 0), (0, Np - N))).astype(jnp.float32)
        bias2 = sigma_bias * f_out2 + mu_bias         # (1, Np) f32, pad stays 0

        cost = pl.CostEstimate(
            flops=4 * Bp * Kp * Np,
            transcendentals=0,
            bytes_accessed=(2 * Kp * Np * w_isz + Bp * Kp * w_isz
                            + Bp * Np * o_isz))

        out = pl.pallas_call(
            _noisy_linear_kernel,
            out_shape=jax.ShapeDtypeStruct((Bp, Np), out_dtype),
            grid_spec=pltpu.PrefetchScalarGridSpec(
                num_scalar_prefetch=0,
                grid=grid,
                in_specs=[
                    pl.BlockSpec((tm, tk), lambda i, j, k: (i, k)),   # x
                    pl.BlockSpec((1, tk), lambda i, j, k: (0, k)),    # f(eps_in)
                    pl.BlockSpec((tk, tn), lambda i, j, k: (k, j)),   # mu_wt
                    pl.BlockSpec((tk, tn), lambda i, j, k: (k, j)),   # sigma_wt
                    pl.BlockSpec((1, tn), lambda i, j, k: (0, j)),    # eff. bias
                    pl.BlockSpec((1, tn), lambda i, j, k: (0, j)),    # f(eps_out)
                ],
                out_specs=pl.BlockSpec((tm, tn), lambda i, j, k: (i, j)),
                scratch_shapes=[pltpu.VMEM((tm, tn), jnp.float32),
                                pltpu.VMEM((tm, tn), jnp.float32)]),
            compiler_params=cparams,
            cost_estimate=cost,
        )(xp, f_in2, mu_wt, sig_wt, bias2, f_out2)
    else:
        # Eval path: mu only.  sigma_weight / eps are never read by the kernel.
        cost = pl.CostEstimate(
            flops=2 * Bp * Kp * Np,
            transcendentals=0,
            bytes_accessed=(Kp * Np * w_isz + Bp * Kp * w_isz
                            + Bp * Np * o_isz))
        out = pl.pallas_call(
            _linear_kernel,
            out_shape=jax.ShapeDtypeStruct((Bp, Np), out_dtype),
            grid_spec=pltpu.PrefetchScalarGridSpec(
                num_scalar_prefetch=0,
                grid=grid,
                in_specs=[
                    pl.BlockSpec((tm, tk), lambda i, j, k: (i, k)),   # x
                    pl.BlockSpec((tk, tn), lambda i, j, k: (k, j)),   # mu_wt
                    pl.BlockSpec((1, tn), lambda i, j, k: (0, j)),    # mu_bias
                ],
                out_specs=pl.BlockSpec((tm, tn), lambda i, j, k: (i, j)),
                scratch_shapes=[pltpu.VMEM((tm, tn), jnp.float32)]),
            compiler_params=cparams,
            cost_estimate=cost,
        )(xp, mu_wt, mu_bias)

    if (Bp, Np) != (B, N):
        out = out[:B, :N]
    return out


def noisy_net_forward(x, prepared, eps_input, eps_output, training=True):
    """NoisyNetLayer.forward.  `prepared` comes from prepare_params()."""
    return _forward_impl(x, prepared["mu_wt"], prepared["sig_wt"],
                         prepared["mu_bias"], prepared["sigma_bias"],
                         eps_input, eps_output,
                         geom=prepared["geom"], training=training)


# ---------------------------------------------------------------------------
# Self-test
# ---------------------------------------------------------------------------

if __name__ == "__main__":
    key = jax.random.PRNGKey(0)
    (k_params, k_noise, k_x,
     k_params2, k_noise2, k_x2) = jax.random.split(key, 6)

    # --- layer 1: 128-aligned features, batch 8 ------------------------------
    in_f, out_f, B = 512, 256, 8
    raw = init_noisy_net_params(k_params, in_f, out_f)
    eps_in, eps_out = sample_noise(k_noise, in_f, out_f)
    x = jax.random.normal(k_x, (B, in_f), jnp.float32)

    # Pure-JAX reference with the materialized noisy weight (PyTorch semantics).
    f_in = jnp.sign(eps_in) * jnp.sqrt(jnp.abs(eps_in))
    f_out = jnp.sign(eps_out) * jnp.sqrt(jnp.abs(eps_out))
    w_eff = raw["sigma_weight"] * jnp.outer(f_out, f_in) + raw["mu_weight"]
    b_eff = raw["sigma_bias"] * f_out + raw["mu_bias"]
    y_ref = x @ w_eff.T + b_eff

    params_f32 = prepare_params(raw, jnp.float32)

    # training mode (noisy weights), f32 compute
    y = noisy_net_forward(x, params_f32, eps_in, eps_out, training=True)
    jax.block_until_ready(y)
    assert jnp.allclose(y, y_ref, atol=1e-4, rtol=1e-4), \
        float(jnp.max(jnp.abs(y - y_ref)))

    # eval mode (mu only)
    y_eval = noisy_net_forward(x, params_f32, eps_in, eps_out, training=False)
    jax.block_until_ready(y_eval)
    y_eval_ref = x @ raw["mu_weight"].T + raw["mu_bias"]
    assert jnp.allclose(y_eval, y_eval_ref, atol=1e-4, rtol=1e-4)

    # bf16 weight storage (pre-cast/pre-padded once), f32 accumulation
    params_bf16 = prepare_params(raw, jnp.bfloat16)
    y_bf16 = noisy_net_forward(x, params_bf16, eps_in, eps_out, training=True)
    jax.block_until_ready(y_bf16)
    assert jnp.allclose(y_bf16, y_ref, atol=5e-2, rtol=5e-2)

    # --- layer 2: non-tile-aligned shapes exercise the padding path ----------
    in_f2, out_f2, B2 = 300, 130, 3
    raw2 = init_noisy_net_params(k_params2, in_f2, out_f2)
    eps_in2, eps_out2 = sample_noise(k_noise2, in_f2, out_f2)
    x2 = jax.random.normal(k_x2, (B2, in_f2), jnp.float32)

    fi2 = jnp.sign(eps_in2) * jnp.sqrt(jnp.abs(eps_in2))
    fo2 = jnp.sign(eps_out2) * jnp.sqrt(jnp.abs(eps_out2))
    w_eff2 = raw2["sigma_weight"] * jnp.outer(fo2, fi2) + raw2["mu_weight"]
    b_eff2 = raw2["sigma_bias"] * fo2 + raw2["mu_bias"]

    params2 = prepare_params(raw2, jnp.float32)
    y2 = noisy_net_forward(x2, params2, eps_in2, eps_out2, training=True)
    jax.block_until_ready(y2)
    assert jnp.allclose(y2, x2 @ w_eff2.T + b_eff2, atol=1e-4, rtol=1e-4)

    y2_eval = noisy_net_forward(x2, params2, eps_in2, eps_out2, training=False)
    jax.block_until_ready(y2_eval)
    assert jnp.allclose(y2_eval, x2 @ raw2["mu_weight"].T + raw2["mu_bias"],
                        atol=1e-4, rtol=1e-4)

    print("KERNEL_OK")
</pallas_src>

<mosaic_0001>
module attributes {stable_mosaic.version = 11 : i64} {
  func.func @_noisy_linear_kernel(%arg0: i32, %arg1: i32, %arg2: i32, %arg3: memref<8x512xf32, #tpu.memory_space<vmem>>, %arg4: memref<1x512xf32, #tpu.memory_space<vmem>>, %arg5: memref<512x256xf32, #tpu.memory_space<vmem>>, %arg6: memref<512x256xf32, #tpu.memory_space<vmem>>, %arg7: memref<1x256xf32, #tpu.memory_space<vmem>>, %arg8: memref<1x256xf32, #tpu.memory_space<vmem>>, %arg9: memref<8x256xf32, #tpu.memory_space<vmem>>, %arg10: memref<8x256xf32, #tpu.memory_space<vmem>>, %arg11: memref<8x256xf32, #tpu.memory_space<vmem>>) attributes {dimension_semantics = [#tpu.dimension_semantics<parallel>, #tpu.dimension_semantics<parallel>, #tpu.dimension_semantics<arbitrary>], iteration_bounds = array<i64: 1, 1, 1>, scalar_prefetch = 0 : i64, scratch_operands = 2 : i64, tpu.core_type = #tpu.core_type<tc>, window_params = [{transform_indices = @transform_0, window_bounds = array<i64: 8, 512>}, {transform_indices = @transform_1, window_bounds = array<i64: 1, 512>}, {transform_indices = @transform_2, window_bounds = array<i64: 512, 256>}, {transform_indices = @transform_3, window_bounds = array<i64: 512, 256>}, {transform_indices = @transform_4, window_bounds = array<i64: 1, 256>}, {transform_indices = @transform_5, window_bounds = array<i64: 1, 256>}, {transform_indices = @transform_6, window_bounds = array<i64: 8, 256>}]} {
    %c0_i32 = arith.constant 0 : i32
    %0 = arith.cmpi eq, %arg2, %c0_i32 : i32
    %1 = arith.extui %0 : i1 to i32
    %c0_i32_0 = arith.constant 0 : i32
    %2 = arith.cmpi ne, %1, %c0_i32_0 : i32
    scf.if %2 {
      %cst_19 = arith.constant 0.000000e+00 : f32
      %20 = vector.broadcast %cst_19 : f32 to vector<8x256xf32>
      %c0_20 = arith.constant 0 : index
      %c0_21 = arith.constant 0 : index
      %21 = vector.load %arg10[%c0_20, %c0_21] : memref<8x256xf32, #tpu.memory_space<vmem>>, vector<8x256xf32>
      tpu.vector_store %arg10[%c0_20, %c0_21], %20 {strides = array<i32>} : memref<8x256xf32, #tpu.memory_space<vmem>>, vector<8x256xf32>,
      %cst_22 = arith.constant 0.000000e+00 : f32
      %22 = vector.broadcast %cst_22 : f32 to vector<8x256xf32>
      %c0_23 = arith.constant 0 : index
      %c0_24 = arith.constant 0 : index
      %23 = vector.load %arg11[%c0_23, %c0_24] : memref<8x256xf32, #tpu.memory_space<vmem>>, vector<8x256xf32>
      tpu.vector_store %arg11[%c0_23, %c0_24], %22 {strides = array<i32>} : memref<8x256xf32, #tpu.memory_space<vmem>>, vector<8x256xf32>,
    } else {
    }
    %c0 = arith.constant 0 : index
    %c0_1 = arith.constant 0 : index
    %3 = vector.load %arg3[%c0, %c0_1] : memref<8x512xf32, #tpu.memory_space<vmem>>, vector<8x512xf32>
    %c0_2 = arith.constant 0 : index
    %c0_3 = arith.constant 0 : index
    %4 = vector.load %arg4[%c0_2, %c0_3] : memref<1x512xf32, #tpu.memory_space<vmem>>, vector<1x512xf32>
    %5 = vector.broadcast %4 : vector<1x512xf32> to vector<8x512xf32>
    %6 = arith.mulf %3, %5 : vector<8x512xf32>
    %c0_4 = arith.constant 0 : index
    %c0_5 = arith.constant 0 : index
    %7 = vector.load %arg10[%c0_4, %c0_5] : memref<8x256xf32, #tpu.memory_space<vmem>>, vector<8x256xf32>
    %c0_6 = arith.constant 0 : index
    %c0_7 = arith.constant 0 : index
    %8 = vector.load %arg5[%c0_6, %c0_7] : memref<512x256xf32, #tpu.memory_space<vmem>>, vector<512x256xf32>
    %cst = arith.constant dense<0.000000e+00> : vector<8x256xf32>
    %9 = tpu.matmul %3, %8, %cst {dimension_numbers = #tpu.dot_dimension_numbers<[1], [0], [0], [1], [0, 0, 1, 1], [], []>} : vector<8x512xf32>, vector<512x256xf32>, vector<8x256xf32> -> vector<8x256xf32>
    %10 = arith.addf %7, %9 : vector<8x256xf32>
    %c0_8 = arith.constant 0 : index
    %c0_9 = arith.constant 0 : index
    %11 = vector.load %arg10[%c0_8, %c0_9] : memref<8x256xf32, #tpu.memory_space<vmem>>, vector<8x256xf32>
    tpu.vector_store %arg10[%c0_8, %c0_9], %10 {strides = array<i32>} : memref<8x256xf32, #tpu.memory_space<vmem>>, vector<8x256xf32>,
    %c0_10 = arith.constant 0 : index
    %c0_11 = arith.constant 0 : index
    %12 = vector.load %arg11[%c0_10, %c0_11] : memref<8x256xf32, #tpu.memory_space<vmem>>, vector<8x256xf32>
    %c0_12 = arith.constant 0 : index
    %c0_13 = arith.constant 0 : index
    %13 = vector.load %arg6[%c0_12, %c0_13] : memref<512x256xf32, #tpu.memory_space<vmem>>, vector<512x256xf32>
    %cst_14 = arith.constant dense<0.000000e+00> : vector<8x256xf32>
    %14 = tpu.matmul %6, %13, %cst_14 {dimension_numbers = #tpu.dot_dimension_numbers<[1], [0], [0], [1], [0, 0, 1, 1], [], []>} : vector<8x512xf32>, vector<512x256xf32>, vector<8x256xf32> -> vector<8x256xf32>
    %15 = arith.addf %12, %14 : vector<8x256xf32>
    %c0_15 = arith.constant 0 : index
    %c0_16 = arith.constant 0 : index
    %16 = vector.load %arg11[%c0_15, %c0_16] : memref<8x256xf32, #tpu.memory_space<vmem>>, vector<8x256xf32>
    tpu.vector_store %arg11[%c0_15, %c0_16], %15 {strides = array<i32>} : memref<8x256xf32, #tpu.memory_space<vmem>>, vector<8x256xf32>,
    %c0_i32_17 = arith.constant 0 : i32
    %17 = arith.cmpi eq, %arg2, %c0_i32_17 : i32
    %18 = arith.extui %17 : i1 to i32
    %c0_i32_18 = arith.constant 0 : i32
    %19 = arith.cmpi ne, %18, %c0_i32_18 : i32
    scf.if %19 {
      %c0_19 = arith.constant 0 : index
      %c0_20 = arith.constant 0 : index
      %20 = vector.load %arg10[%c0_19, %c0_20] : memref<8x256xf32, #tpu.memory_space<vmem>>, vector<8x256xf32>
      %c0_21 = arith.constant 0 : index
      %c0_22 = arith.constant 0 : index
      %21 = vector.load %arg11[%c0_21, %c0_22] : memref<8x256xf32, #tpu.memory_space<vmem>>, vector<8x256xf32>
      %c0_23 = arith.constant 0 : index
      %c0_24 = arith.constant 0 : index
      %22 = vector.load %arg8[%c0_23, %c0_24] : memref<1x256xf32, #tpu.memory_space<vmem>>, vector<1x256xf32>
      %23 = vector.broadcast %22 : vector<1x256xf32> to vector<8x256xf32>
      %24 = arith.mulf %21, %23 : vector<8x256xf32>
      %25 = arith.addf %20, %24 : vector<8x256xf32>
      %c0_25 = arith.constant 0 : index
      %c0_26 = arith.constant 0 : index
      %26 = vector.load %arg7[%c0_25, %c0_26] : memref<1x256xf32, #tpu.memory_space<vmem>>, vector<1x256xf32>
      %27 = vector.broadcast %26 : vector<1x256xf32> to vector<8x256xf32>
      %28 = arith.addf %25, %27 : vector<8x256xf32>
      %c0_27 = arith.constant 0 : index
      %c0_28 = arith.constant 0 : index
      %29 = vector.load %arg9[%c0_27, %c0_28] : memref<8x256xf32, #tpu.memory_space<vmem>>, vector<8x256xf32>
      tpu.vector_store %arg9[%c0_27, %c0_28], %28 {strides = array<i32>} : memref<8x256xf32, #tpu.memory_space<vmem>>, vector<8x256xf32>,
    } else {
    }
    return
  }
  func.func @transform_0(%arg0: i32, %arg1: i32, %arg2: i32) -> (i32, i32) {
    %c0_i32 = arith.constant 0 : i32
    return %arg0, %arg2 : i32, i32
  }
  func.func @transform_1(%arg0: i32, %arg1: i32, %arg2: i32) -> (i32, i32) {
    %c0_i32 = arith.constant 0 : i32
    %c0_i32_0 = arith.constant 0 : i32
    return %c0_i32, %arg2 : i32, i32
  }
  func.func @transform_2(%arg0: i32, %arg1: i32, %arg2: i32) -> (i32, i32) {
    %c0_i32 = arith.constant 0 : i32
    return %arg2, %arg1 : i32, i32
  }
  func.func @transform_3(%arg0: i32, %arg1: i32, %arg2: i32) -> (i32, i32) {
    %c0_i32 = arith.constant 0 : i32
    return %arg2, %arg1 : i32, i32
  }
  func.func @transform_4(%arg0: i32, %arg1: i32, %arg2: i32) -> (i32, i32) {
    %c0_i32 = arith.constant 0 : i32
    %c0_i32_0 = arith.constant 0 : i32
    return %c0_i32, %arg1 : i32, i32
  }
  func.func @transform_5(%arg0: i32, %arg1: i32, %arg2: i32) -> (i32, i32) {
    %c0_i32 = arith.constant 0 : i32
    %c0_i32_0 = arith.constant 0 : i32
    return %c0_i32, %arg1 : i32, i32
  }
  func.func @transform_6(%arg0: i32, %arg1: i32, %arg2: i32) -> (i32, i32) {
    %c0_i32 = arith.constant 0 : i32
    return %arg0, %arg1 : i32, i32
  }
}

</mosaic_0001>

<llo_original>
// kernel: _forward_impl.1
$region0: #{_forward_impl.1}
  #allocation0 [shape = 'u32[]', space=smem, size = 0x4, offset = 0x4, fixed_abs, tag = 'smem constant byte address 0x4 - core index']
  #allocation1 [shape = 'u32[72,128]{1,0:T(1,128)}', space=vmem, size = 0x9000, scoped, tag = 'internal scratch']
  #allocation2 [shape = 'f32[8,256]{1,0:T(8,128)}', space=vmem, size = 0x2000, scoped, tag = 'scratch operand']
  #allocation3 [shape = 'f32[8,256]{1,0:T(8,128)}', space=vmem, size = 0x2000, scoped, tag = 'scratch operand']
  %s0 = inlined_call_operand.hbm [shape: f32[8,512], index: 0, kind: input, shape index: {}]
  %s1 = inlined_call_operand.vmem [shape: f32[1,512], index: 1, kind: input, shape index: {}]
  %s2 = inlined_call_operand.hbm [shape: f32[512,256], index: 2, kind: input, shape index: {}]
  %s3 = inlined_call_operand.hbm [shape: f32[512,256], index: 3, kind: input, shape index: {}]
  %s4 = inlined_call_operand.vmem [shape: f32[1,256], index: 4, kind: input, shape index: {}]
  %s5 = inlined_call_operand.vmem [shape: f32[1,256], index: 5, kind: input, shape index: {}]
  %s6 = inlined_call_operand.hbm [shape: f32[8,256], index: 6, kind: output, shape index: {}]
  %s7 = sld [smem:[#allocation0]]
  $region54: #{_forward_impl.1} parent=0
    _
  %s9 = ssub.s32 1, %s7
  %s10 = scalar_select 0, %s9, %s7
  $region1: #{_forward_impl.1} parent=0
    #allocation4 [shape = 'u8[16384]{0}', space=vmem, size = 0x4000, scoped, tag = 'input window, operand 0, single buffered']
    #allocation5 [shape = 's32[1]{0}', space=sflag, size = 0x4, scoped, tag = 'scoped memory for _forward_impl.1']
    #allocation6 [shape = 's32[1]{0}', space=sflag, size = 0x4, scoped, tag = 'scoped memory for _forward_impl.1']
    #allocation7 [shape = 'u8[524288]{0}', space=vmem, size = 0x80000, scoped, tag = 'input window, operand 2, single buffered']
    #allocation8 [shape = 's32[1]{0}', space=sflag, size = 0x4, scoped, tag = 'scoped memory for _forward_impl.1']
    #allocation9 [shape = 'u8[524288]{0}', space=vmem, size = 0x80000, scoped, tag = 'input window, operand 3, single buffered']
    #allocation10 [shape = 'u8[8192]{0}', space=vmem, size = 0x2000, scoped, tag = 'output window, operand 0, single buffered']
    %11 = vsyncpa [#allocation5], 0
    %12 = vsyncpa [#allocation8], 0
    %13 = vsyncpa [#allocation6], 0
    // Predicated region
    $region2: #{_forward_impl.1} parent=1 // pred_check
      _
    $region3: #{_forward_impl.1} parent=1 // pred_check_branch
      %15 = sbr.rel (0) target = $region5
    $region4: #{_forward_impl.1} parent=1 // pred_region
      %17 = vsyncadd [#allocation5], 0
      %s19 = sshll.u32 %s0, 4
      %s20 = int_to_ptr.hbm [resolvable:$true] %s19
      %s21 = sshll.u32 [#allocation4], 4
      %s22 = int_to_ptr.vmem [resolvable:$true] %s21
      %24 = dma.hbm_to_vmem [thread:$0]  %s20, 512, %s22, [#allocation5]
    $region5: #{_forward_impl.1} parent=1 // pred_fallthru
      _
    // Predicated region
    $region6: #{_forward_impl.1} parent=1 // pred_check
      _
    $region7: #{_forward_impl.1} parent=1 // pred_check_branch
      %26 = sbr.rel (0) target = $region9
    $region8: #{_forward_impl.1} parent=1 // pred_region
      _
    $region9: #{_forward_impl.1} parent=1 // pred_fallthru
      _
    // Predicated region
    $region10: #{_forward_impl.1} parent=1 // pred_check
      _
    $region11: #{_forward_impl.1} parent=1 // pred_check_branch
      %28 = sbr.rel (0) target = $region13
    $region12: #{_forward_impl.1} parent=1 // pred_region
      %30 = vsyncadd [#allocation8], 0
      %s31 = sshll.u32 %s2, 4
      %s32 = int_to_ptr.hbm [resolvable:$true] %s31
      %s33 = sshll.u32 [#allocation7], 4
      %s34 = int_to_ptr.vmem [resolvable:$true] %s33
      %39 = dma.hbm_to_vmem [thread:$0]  %s32, 16384, %s34, [#allocation8], 256, 256, 16
    $region13: #{_forward_impl.1} parent=1 // pred_fallthru
      _
    // Predicated region
    $region14: #{_forward_impl.1} parent=1 // pred_check
      _
    $region15: #{_forward_impl.1} parent=1 // pred_check_branch
      %41 = sbr.rel (0) target = $region17
    $region16: #{_forward_impl.1} parent=1 // pred_region
      %43 = vsyncadd [#allocation8], 0
      %s44 = sshll.u32 %s3, 4
      %s45 = int_to_ptr.hbm [resolvable:$true] %s44
      %s46 = sshll.u32 [#allocation9], 4
      %s47 = int_to_ptr.vmem [resolvable:$true] %s46
      %52 = dma.hbm_to_vmem [thread:$0]  %s45, 16384, %s47, [#allocation8], 256, 256, 16
    $region17: #{_forward_impl.1} parent=1 // pred_fallthru
      _
    // Predicated region
    $region18: #{_forward_impl.1} parent=1 // pred_check
      _
    $region19: #{_forward_impl.1} parent=1 // pred_check_branch
      %54 = sbr.rel (0) target = $region21
    $region20: #{_forward_impl.1} parent=1 // pred_region
      _
    $region21: #{_forward_impl.1} parent=1 // pred_fallthru
      _
    // Predicated region
    $region22: #{_forward_impl.1} parent=1 // pred_check
      _
    $region23: #{_forward_impl.1} parent=1 // pred_check_branch
      %56 = sbr.rel (0) target = $region25
    $region24: #{_forward_impl.1} parent=1 // pred_region
      _
    $region25: #{_forward_impl.1} parent=1 // pred_fallthru
      _
    // Predicated region
    $region26: #{_forward_impl.1} parent=1 // pred_check
      _
    $region27: #{_forward_impl.1} parent=1 // pred_check_branch
      %58 = sbr.rel (0) target = $region29
    $region28: #{_forward_impl.1} parent=1 // pred_region
      %60 = dma.done [#allocation5], 512
    $region29: #{_forward_impl.1} parent=1 // pred_fallthru
      _
    // Predicated region
    $region30: #{_forward_impl.1} parent=1 // pred_check
      _
    $region31: #{_forward_impl.1} parent=1 // pred_check_branch
      %62 = sbr.rel (0) target = $region33
    $region32: #{_forward_impl.1} parent=1 // pred_region
      %64 = dma.done [#allocation8], 16384
    $region33: #{_forward_impl.1} parent=1 // pred_fallthru
      _
    // Predicated region
    $region34: #{_forward_impl.1} parent=1 // pred_check
      _
    $region35: #{_forward_impl.1} parent=1 // pred_check_branch
      %66 = sbr.rel (0) target = $region37
    $region36: #{_forward_impl.1} parent=1 // pred_region
      %68 = dma.done [#allocation8], 16384
    $region37: #{_forward_impl.1} parent=1 // pred_fallthru
      _
    %p69 = scmp.eq.s32.totalorder 0, 0
    // Predicated region
    $region38: #{_forward_impl.1} parent=1 // pred_check
      %p70 = pneg %p69
    $region39: #{_forward_impl.1} parent=1 // pred_check_branch
      %72 = sbr.rel (%p70) target = $region41
    $region40: #{_forward_impl.1} parent=1 // pred_region
      %73 = vst [vmem:[#allocation2] sm:$0xff] 0.0
      %74 = vst [vmem:[#allocation2 + $0x8] sm:$0xff] 0.0
      %75 = vst [vmem:[#allocation3] sm:$0xff] 0.0
      %76 = vst [vmem:[#allocation3 + $0x8] sm:$0xff] 0.0
    $region41: #{_forward_impl.1} parent=1 // pred_fallthru
      _
    %v77 = vld [vmem:[#allocation4] sm:$0xff]
    %v78 = vld [vmem:[#allocation4 + $0x8] sm:$0xff]
    %v79 = vld [vmem:[#allocation4 + $0x10] sm:$0xff]
    %v80 = vld [vmem:[#allocation4 + $0x18] sm:$0xff]
    %v81 = vld [vmem:[%s1] sm:$0xf]
    %v83 = vperm.slane %v81, 0
    %v84 = vperm.slane %v81, 1
    %v85 = vperm.slane %v81, 2
    %v86 = vperm.slane %v81, 3
    %v91 = vmul.f32 %v77, %v83
    %v92 = vmul.f32 %v78, %v84
    %v93 = vmul.f32 %v79, %v85
    %v94 = vmul.f32 %v80, %v86
    %v95 = vld [vmem:[#allocation2] sm:$0xff]
    %v96 = vld [vmem:[#allocation2 + $0x8] sm:$0xff]
    %v97 = vld [vmem:[#allocation7] sm:$0xff]
    %v98 = vld [vmem:[#allocation7 + $0x8] sm:$0xff]
    %v99 = vld [vmem:[#allocation7 + $0x10] sm:$0xff]
    %v100 = vld [vmem:[#allocation7 + $0x18] sm:$0xff]
    %v101 = vld [vmem:[#allocation7 + $0x20] sm:$0xff]
    %v102 = vld [vmem:[#allocation7 + $0x28] sm:$0xff]
    %v103 = vld [vmem:[#allocation7 + $0x30] sm:$0xff]
    %v104 = vld [vmem:[#allocation7 + $0x38] sm:$0xff]
    %v105 = vld [vmem:[#allocation7 + $0x40] sm:$0xff]
    %v106 = vld [vmem:[#allocation7 + $0x48] sm:$0xff]
    %v107 = vld [vmem:[#allocation7 + $0x50] sm:$0xff]
    %v108 = vld [vmem:[#allocation7 + $0x58] sm:$0xff]
    %v109 = vld [vmem:[#allocation7 + $0x60] sm:$0xff]
    %v110 = vld [vmem:[#allocation7 + $0x68] sm:$0xff]
    %v111 = vld [vmem:[#allocation7 + $0x70] sm:$0xff]
    %v112 = vld [vmem:[#allocation7 + $0x78] sm:$0xff]
    %v113 = vld [vmem:[#allocation7 + $0x80] sm:$0xff]
    %v114 = vld [vmem:[#allocation7 + $0x88] sm:$0xff]
    %v115 = vld [vmem:[#allocation7 + $0x90] sm:$0xff]
    %v116 = vld [vmem:[#allocation7 + $0x98] sm:$0xff]
    %v117 = vld [vmem:[#allocation7 + $0xa0] sm:$0xff]
    %v118 = vld [vmem:[#allocation7 + $0xa8] sm:$0xff]
    %v119 = vld [vmem:[#allocation7 + $0xb0] sm:$0xff]
    %v120 = vld [vmem:[#allocation7 + $0xb8] sm:$0xff]
    %v121 = vld [vmem:[#allocation7 + $0xc0] sm:$0xff]
    %v122 = vld [vmem:[#allocation7 + $0xc8] sm:$0xff]
    %v123 = vld [vmem:[#allocation7 + $0xd0] sm:$0xff]
    %v124 = vld [vmem:[#allocation7 + $0xd8] sm:$0xff]
    %v125 = vld [vmem:[#allocation7 + $0xe0] sm:$0xff]
    %v126 = vld [vmem:[#allocation7 + $0xe8] sm:$0xff]
    %v127 = vld [vmem:[#allocation7 + $0xf0] sm:$0xff]
    %v128 = vld [vmem:[#allocation7 + $0xf8] sm:$0xff]
    %v129 = vld [vmem:[#allocation7 + $0x100] sm:$0xff]
    %v130 = vld [vmem:[#allocation7 + $0x108] sm:$0xff]
    %v131 = vld [vmem:[#allocation7 + $0x110] sm:$0xff]
    %v132 = vld [vmem:[#allocation7 + $0x118] sm:$0xff]
    %v133 = vld [vmem:[#allocation7 + $0x120] sm:$0xff]
    %v134 = vld [vmem:[#allocation7 + $0x128] sm:$0xff]
    %v135 = vld [vmem:[#allocation7 + $0x130] sm:$0xff]
    %v136 = vld [vmem:[#allocation7 + $0x138] sm:$0xff]
    %v137 = vld [vmem:[#allocation7 + $0x140] sm:$0xff]
    %v138 = vld [vmem:[#allocation7 + $0x148] sm:$0xff]
    %v139 = vld [vmem:[#allocation7 + $0x150] sm:$0xff]
    %v140 = vld [vmem:[#allocation7 + $0x158] sm:$0xff]
    %v141 = vld [vmem:[#allocation7 + $0x160] sm:$0xff]
    %v142 = vld [vmem:[#allocation7 + $0x168] sm:$0xff]
    %v143 = vld [vmem:[#allocation7 + $0x170] sm:$0xff]
    %v144 = vld [vmem:[#allocation7 + $0x178] sm:$0xff]
    %v145 = vld [vmem:[#allocation7 + $0x180] sm:$0xff]
    %v146 = vld [vmem:[#allocation7 + $0x188] sm:$0xff]
    %v147 = vld [vmem:[#allocation7 + $0x190] sm:$0xff]
    %v148 = vld [vmem:[#allocation7 + $0x198] sm:$0xff]
    %v149 = vld [vmem:[#allocation7 + $0x1a0] sm:$0xff]
    %v150 = vld [vmem:[#allocation7 + $0x1a8] sm:$0xff]
    %v151 = vld [vmem:[#allocation7 + $0x1b0] sm:$0xff]
    %v152 = vld [vmem:[#allocation7 + $0x1b8] sm:$0xff]
    %v153 = vld [vmem:[#allocation7 + $0x1c0] sm:$0xff]
    %v154 = vld [vmem:[#allocation7 + $0x1c8] sm:$0xff]
    %v155 = vld [vmem:[#allocation7 + $0x1d0] sm:$0xff]
    %v156 = vld [vmem:[#allocation7 + $0x1d8] sm:$0xff]
    %v157 = vld [vmem:[#allocation7 + $0x1e0] sm:$0xff]
    %v158 = vld [vmem:[#allocation7 + $0x1e8] sm:$0xff]
    %v159 = vld [vmem:[#allocation7 + $0x1f0] sm:$0xff]
    %v160 = vld [vmem:[#allocation7 + $0x1f8] sm:$0xff]
    %v161 = vld [vmem:[#allocation7 + $0x200] sm:$0xff]
    %v162 = vld [vmem:[#allocation7 + $0x208] sm:$0xff]
    %v163 = vld [vmem:[#allocation7 + $0x210] sm:$0xff]
    %v164 = vld [vmem:[#allocation7 + $0x218] sm:$0xff]
    %v165 = vld [vmem:[#allocation7 + $0x220] sm:$0xff]
    %v166 = vld [vmem:[#allocation7 + $0x228] sm:$0xff]
    %v167 = vld [vmem:[#allocation7 + $0x230] sm:$0xff]
    %v168 = vld [vmem:[#allocation7 + $0x238] sm:$0xff]
    %v169 = vld [vmem:[#allocation7 + $0x240] sm:$0xff]
    %v170 = vld [vmem:[#allocation7 + $0x248] sm:$0xff]
    %v171 = vld [vmem:[#allocation7 + $0x250] sm:$0xff]
    %v172 = vld [vmem:[#allocation7 + $0x258] sm:$0xff]
    %v173 = vld [vmem:[#allocation7 + $0x260] sm:$0xff]
    %v174 = vld [vmem:[#allocation7 + $0x268] sm:$0xff]
    %v175 = vld [vmem:[#allocation7 + $0x270] sm:$0xff]
    %v176 = vld [vmem:[#allocation7 + $0x278] sm:$0xff]
    %v177 = vld [vmem:[#allocation7 + $0x280] sm:$0xff]
    %v178 = vld [vmem:[#allocation7 + $0x288] sm:$0xff]
    %v179 = vld [vmem:[#allocation7 + $0x290] sm:$0xff]
    %v180 = vld [vmem:[#allocation7 + $0x298] sm:$0xff]
    %v181 = vld [vmem:[#allocation7 + $0x2a0] sm:$0xff]
    %v182 = vld [vmem:[#allocation7 + $0x2a8] sm:$0xff]
    %v183 = vld [vmem:[#allocation7 + $0x2b0] sm:$0xff]
    %v184 = vld [vmem:[#allocation7 + $0x2b8] sm:$0xff]
    %v185 = vld [vmem:[#allocation7 + $0x2c0] sm:$0xff]
    %v186 = vld [vmem:[#allocation7 + $0x2c8] sm:$0xff]
    %v187 = vld [vmem:[#allocation7 + $0x2d0] sm:$0xff]
    %v188 = vld [vmem:[#allocation7 + $0x2d8] sm:$0xff]
    %v189 = vld [vmem:[#allocation7 + $0x2e0] sm:$0xff]
    %v190 = vld [vmem:[#allocation7 + $0x2e8] sm:$0xff]
    %v191 = vld [vmem:[#allocation7 + $0x2f0] sm:$0xff]
    %v192 = vld [vmem:[#allocation7 + $0x2f8] sm:$0xff]
    %v193 = vld [vmem:[#allocation7 + $0x300] sm:$0xff]
    %v194 = vld [vmem:[#allocation7 + $0x308] sm:$0xff]
    %v195 = vld [vmem:[#allocation7 + $0x310] sm:$0xff]
    %v196 = vld [vmem:[#allocation7 + $0x318] sm:$0xff]
    %v197 = vld [vmem:[#allocation7 + $0x320] sm:$0xff]
    %v198 = vld [vmem:[#allocation7 + $0x328] sm:$0xff]
    %v199 = vld [vmem:[#allocation7 + $0x330] sm:$0xff]
    %v200 = vld [vmem:[#allocation7 + $0x338] sm:$0xff]
    %v201 = vld [vmem:[#allocation7 + $0x340] sm:$0xff]
    %v202 = vld [vmem:[#allocation7 + $0x348] sm:$0xff]
    %v203 = vld [vmem:[#allocation7 + $0x350] sm:$0xff]
    %v204 = vld [vmem:[#allocation7 + $0x358] sm:$0xff]
    %v205 = vld [vmem:[#allocation7 + $0x360] sm:$0xff]
    %v206 = vld [vmem:[#allocation7 + $0x368] sm:$0xff]
    %v207 = vld [vmem:[#allocation7 + $0x370] sm:$0xff]
    %v208 = vld [vmem:[#allocation7 + $0x378] sm:$0xff]
    %v209 = vld [vmem:[#allocation7 + $0x380] sm:$0xff]
    %v210 = vld [vmem:[#allocation7 + $0x388] sm:$0xff]
    %v211 = vld [vmem:[#allocation7 + $0x390] sm:$0xff]
    %v212 = vld [vmem:[#allocation7 + $0x398] sm:$0xff]
    %v213 = vld [vmem:[#allocation7 + $0x3a0] sm:$0xff]
    %v214 = vld [vmem:[#allocation7 + $0x3a8] sm:$0xff]
    %v215 = vld [vmem:[#allocation7 + $0x3b0] sm:$0xff]
    %v216 = vld [vmem:[#allocation7 + $0x3b8] sm:$0xff]
    %v217 = vld [vmem:[#allocation7 + $0x3c0] sm:$0xff]
    %v218 = vld [vmem:[#allocation7 + $0x3c8] sm:$0xff]
    %v219 = vld [vmem:[#allocation7 + $0x3d0] sm:$0xff]
    %v220 = vld [vmem:[#allocation7 + $0x3d8] sm:$0xff]
    %v221 = vld [vmem:[#allocation7 + $0x3e0] sm:$0xff]
    %v222 = vld [vmem:[#allocation7 + $0x3e8] sm:$0xff]
    %v223 = vld [vmem:[#allocation7 + $0x3f0] sm:$0xff]
    %v224 = vld [vmem:[#allocation7 + $0x3f8] sm:$0xff]
    %225 = vmatpush.msra.mxu0 %v127
    %226 = vmatpush.msra.mxu0 %v125
    %227 = vmatpush.msra.mxu0 %v123
    %228 = vmatpush.msra.mxu0 %v121
    %229 = vmatpush.msra.mxu0 %v119
    %230 = vmatpush.msra.mxu0 %v117
    %231 = vmatpush.msra.mxu0 %v115
    %232 = vmatpush.msra.mxu0 %v113
    %233 = vmatpush.msra.mxu0 %v111
    %234 = vmatpush.msra.mxu0 %v109
    %235 = vmatpush.msra.mxu0 %v107
    %236 = vmatpush.msra.mxu0 %v105
    %237 = vmatpush.msra.mxu0 %v103
    %238 = vmatpush.msra.mxu0 %v101
    %239 = vmatpush.msra.mxu0 %v99
    %240 = vmatpush.msra.mxu0 %v97
    %241 = vmatmul.f32.gmra.mxu0 %v77
    %v242 = vpop.f32.mrf.mxu0
    %v243 = vadd.f32 0.0, %v242
    %244 = vdwg.mxu0
    %245 = vmatpush.msra.mxu0 %v159
    %246 = vmatpush.msra.mxu0 %v157
    %247 = vmatpush.msra.mxu0 %v155
    %248 = vmatpush.msra.mxu0 %v153
    %249 = vmatpush.msra.mxu0 %v151
    %250 = vmatpush.msra.mxu0 %v149
    %251 = vmatpush.msra.mxu0 %v147
    %252 = vmatpush.msra.mxu0 %v145
    %253 = vmatpush.msra.mxu0 %v143
    %254 = vmatpush.msra.mxu0 %v141
    %255 = vmatpush.msra.mxu0 %v139
    %256 = vmatpush.msra.mxu0 %v137
    %257 = vmatpush.msra.mxu0 %v135
    %258 = vmatpush.msra.mxu0 %v133
    %259 = vmatpush.msra.mxu0 %v131
    %260 = vmatpush.msra.mxu0 %v129
    %261 = vmatmul.f32.gmra.mxu0 %v78
    %v262 = vpop.f32.mrf.mxu0
    %v263 = vadd.f32 %v243, %v262
    %264 = vdwg.mxu0
    %265 = vmatpush.msra.mxu0 %v191
    %266 = vmatpush.msra.mxu0 %v189
    %267 = vmatpush.msra.mxu0 %v187
    %268 = vmatpush.msra.mxu0 %v185
    %269 = vmatpush.msra.mxu0 %v183
    %270 = vmatpush.msra.mxu0 %v181
    %271 = vmatpush.msra.mxu0 %v179
    %272 = vmatpush.msra.mxu0 %v177
    %273 = vmatpush.msra.mxu0 %v175
    %274 = vmatpush.msra.mxu0 %v173
    %275 = vmatpush.msra.mxu0 %v171
    %276 = vmatpush.msra.mxu0 %v169
    %277 = vmatpush.msra.mxu0 %v167
    %278 = vmatpush.msra.mxu0 %v165
    %279 = vmatpush.msra.mxu0 %v163
    %280 = vmatpush.msra.mxu0 %v161
    %281 = vmatmul.f32.gmra.mxu0 %v79
    %v282 = vpop.f32.mrf.mxu0
    %v283 = vadd.f32 %v263, %v282
    %284 = vdwg.mxu0
    %285 = vmatpush.msra.mxu0 %v223
    %286 = vmatpush.msra.mxu0 %v221
    %287 = vmatpush.msra.mxu0 %v219
    %288 = vmatpush.msra.mxu0 %v217
    %289 = vmatpush.msra.mxu0 %v215
    %290 = vmatpush.msra.mxu0 %v213
    %291 = vmatpush.msra.mxu0 %v211
    %292 = vmatpush.msra.mxu0 %v209
    %293 = vmatpush.msra.mxu0 %v207
    %294 = vmatpush.msra.mxu0 %v205
    %295 = vmatpush.msra.mxu0 %v203
    %296 = vmatpush.msra.mxu0 %v201
    %297 = vmatpush.msra.mxu0 %v199
    %298 = vmatpush.msra.mxu0 %v197
    %299 = vmatpush.msra.mxu0 %v195
    %300 = vmatpush.msra.mxu0 %v193
    %301 = vmatmul.f32.gmra.mxu0 %v80
    %v302 = vpop.f32.mrf.mxu0
    %v303 = vadd.f32 %v283, %v302
    %304 = vdwg.mxu0
    %305 = vmatpush.msra.mxu0 %v128
    %306 = vmatpush.msra.mxu0 %v126
    %307 = vmatpush.msra.mxu0 %v124
    %308 = vmatpush.msra.mxu0 %v122
    %309 = vmatpush.msra.mxu0 %v120
    %310 = vmatpush.msra.mxu0 %v118
    %311 = vmatpush.msra.mxu0 %v116
    %312 = vmatpush.msra.mxu0 %v114
    %313 = vmatpush.msra.mxu0 %v112
    %314 = vmatpush.msra.mxu0 %v110
    %315 = vmatpush.msra.mxu0 %v108
    %316 = vmatpush.msra.mxu0 %v106
    %317 = vmatpush.msra.mxu0 %v104
    %318 = vmatpush.msra.mxu0 %v102
    %319 = vmatpush.msra.mxu0 %v100
    %320 = vmatpush.msra.mxu0 %v98
    %321 = vmatmul.f32.gmra.mxu0 %v77
    %v322 = vpop.f32.mrf.mxu0
    %v323 = vadd.f32 0.0, %v322
    %324 = vdwg.mxu0
    %325 = vmatpush.msra.mxu0 %v160
    %326 = vmatpush.msra.mxu0 %v158
    %327 = vmatpush.msra.mxu0 %v156
    %328 = vmatpush.msra.mxu0 %v154
    %329 = vmatpush.msra.mxu0 %v152
    %330 = vmatpush.msra.mxu0 %v150
    %331 = vmatpush.msra.mxu0 %v148
    %332 = vmatpush.msra.mxu0 %v146
    %333 = vmatpush.msra.mxu0 %v144
    %334 = vmatpush.msra.mxu0 %v142
    %335 = vmatpush.msra.mxu0 %v140
    %336 = vmatpush.msra.mxu0 %v138
    %337 = vmatpush.msra.mxu0 %v136
    %338 = vmatpush.msra.mxu0 %v134
    %339 = vmatpush.msra.mxu0 %v132
    %340 = vmatpush.msra.mxu0 %v130
    %341 = vmatmul.f32.gmra.mxu0 %v78
    %v342 = vpop.f32.mrf.mxu0
    %v343 = vadd.f32 %v323, %v342
    %344 = vdwg.mxu0
    %345 = vmatpush.msra.mxu0 %v192
    %346 = vmatpush.msra.mxu0 %v190
    %347 = vmatpush.msra.mxu0 %v188
    %348 = vmatpush.msra.mxu0 %v186
    %349 = vmatpush.msra.mxu0 %v184
    %350 = vmatpush.msra.mxu0 %v182
    %351 = vmatpush.msra.mxu0 %v180
    %352 = vmatpush.msra.mxu0 %v178
    %353 = vmatpush.msra.mxu0 %v176
    %354 = vmatpush.msra.mxu0 %v174
    %355 = vmatpush.msra.mxu0 %v172
    %356 = vmatpush.msra.mxu0 %v170
    %357 = vmatpush.msra.mxu0 %v168
    %358 = vmatpush.msra.mxu0 %v166
    %359 = vmatpush.msra.mxu0 %v164
    %360 = vmatpush.msra.mxu0 %v162
    %361 = vmatmul.f32.gmra.mxu0 %v79
    %v362 = vpop.f32.mrf.mxu0
    %v363 = vadd.f32 %v343, %v362
    %364 = vdwg.mxu0
    %365 = vmatpush.msra.mxu0 %v224
    %366 = vmatpush.msra.mxu0 %v222
    %367 = vmatpush.msra.mxu0 %v220
    %368 = vmatpush.msra.mxu0 %v218
    %369 = vmatpush.msra.mxu0 %v216
    %370 = vmatpush.msra.mxu0 %v214
    %371 = vmatpush.msra.mxu0 %v212
    %372 = vmatpush.msra.mxu0 %v210
    %373 = vmatpush.msra.mxu0 %v208
    %374 = vmatpush.msra.mxu0 %v206
    %375 = vmatpush.msra.mxu0 %v204
    %376 = vmatpush.msra.mxu0 %v202
    %377 = vmatpush.msra.mxu0 %v200
    %378 = vmatpush.msra.mxu0 %v198
    %379 = vmatpush.msra.mxu0 %v196
    %380 = vmatpush.msra.mxu0 %v194
    %381 = vmatmul.f32.gmra.mxu0 %v80
    %v382 = vpop.f32.mrf.mxu0
    %v383 = vadd.f32 %v363, %v382
    %384 = vdwg.mxu0
    %v385 = vadd.f32 %v95, %v303
    %v386 = vadd.f32 %v96, %v383
    %387 = vst [vmem:[#allocation2] sm:$0xff] %v385
    %388 = vst [vmem:[#allocation2 + $0x8] sm:$0xff] %v386
    %v389 = vld [vmem:[#allocation3] sm:$0xff]
    %v390 = vld [vmem:[#allocation3 + $0x8] sm:$0xff]
    %v391 = vld [vmem:[#allocation9] sm:$0xff]
    %v392 = vld [vmem:[#allocation9 + $0x8] sm:$0xff]
    %v393 = vld [vmem:[#allocation9 + $0x10] sm:$0xff]
    %v394 = vld [vmem:[#allocation9 + $0x18] sm:$0xff]
    %v395 = vld [vmem:[#allocation9 + $0x20] sm:$0xff]
    %v396 = vld [vmem:[#allocation9 + $0x28] sm:$0xff]
    %v397 = vld [vmem:[#allocation9 + $0x30] sm:$0xff]
    %v398 = vld [vmem:[#allocation9 + $0x38] sm:$0xff]
    %v399 = vld [vmem:[#allocation9 + $0x40] sm:$0xff]
    %v400 = vld [vmem:[#allocation9 + $0x48] sm:$0xff]
    %v401 = vld [vmem:[#allocation9 + $0x50] sm:$0xff]
    %v402 = vld [vmem:[#allocation9 + $0x58] sm:$0xff]
    %v403 = vld [vmem:[#allocation9 + $0x60] sm:$0xff]
    %v404 = vld [vmem:[#allocation9 + $0x68] sm:$0xff]
    %v405 = vld [vmem:[#allocation9 + $0x70] sm:$0xff]
    %v406 = vld [vmem:[#allocation9 + $0x78] sm:$0xff]
    %v407 = vld [vmem:[#allocation9 + $0x80] sm:$0xff]
    %v408 = vld [vmem:[#allocation9 + $0x88] sm:$0xff]
    %v409 = vld [vmem:[#allocation9 + $0x90] sm:$0xff]
    %v410 = vld [vmem:[#allocation9 + $0x98] sm:$0xff]
    %v411 = vld [vmem:[#allocation9 + $0xa0] sm:$0xff]
    %v412 = vld [vmem:[#allocation9 + $0xa8] sm:$0xff]
    %v413 = vld [vmem:[#allocation9 + $0xb0] sm:$0xff]
    %v414 = vld [vmem:[#allocation9 + $0xb8] sm:$0xff]
    %v415 = vld [vmem:[#allocation9 + $0xc0] sm:$0xff]
    %v416 = vld [vmem:[#allocation9 + $0xc8] sm:$0xff]
    %v417 = vld [vmem:[#allocation9 + $0xd0] sm:$0xff]
    %v418 = vld [vmem:[#allocation9 + $0xd8] sm:$0xff]
    %v419 = vld [vmem:[#allocation9 + $0xe0] sm:$0xff]
    %v420 = vld [vmem:[#allocation9 + $0xe8] sm:$0xff]
    %v421 = vld [vmem:[#allocation9 + $0xf0] sm:$0xff]
    %v422 = vld [vmem:[#allocation9 + $0xf8] sm:$0xff]
    %v423 = vld [vmem:[#allocation9 + $0x100] sm:$0xff]
    %v424 = vld [vmem:[#allocation9 + $0x108] sm:$0xff]
    %v425 = vld [vmem:[#allocation9 + $0x110] sm:$0xff]
    %v426 = vld [vmem:[#allocation9 + $0x118] sm:$0xff]
    %v427 = vld [vmem:[#allocation9 + $0x120] sm:$0xff]
    %v428 = vld [vmem:[#allocation9 + $0x128] sm:$0xff]
    %v429 = vld [vmem:[#allocation9 + $0x130] sm:$0xff]
    %v430 = vld [vmem:[#allocation9 + $0x138] sm:$0xff]
    %v431 = vld [vmem:[#allocation9 + $0x140] sm:$0xff]
    %v432 = vld [vmem:[#allocation9 + $0x148] sm:$0xff]
    %v433 = vld [vmem:[#allocation9 + $0x150] sm:$0xff]
    %v434 = vld [vmem:[#allocation9 + $0x158] sm:$0xff]
    %v435 = vld [vmem:[#allocation9 + $0x160] sm:$0xff]
    %v436 = vld [vmem:[#allocation9 + $0x168] sm:$0xff]
    %v437 = vld [vmem:[#allocation9 + $0x170] sm:$0xff]
    %v438 = vld [vmem:[#allocation9 + $0x178] sm:$0xff]
    %v439 = vld [vmem:[#allocation9 + $0x180] sm:$0xff]
    %v440 = vld [vmem:[#allocation9 + $0x188] sm:$0xff]
    %v441 = vld [vmem:[#allocation9 + $0x190] sm:$0xff]
    %v442 = vld [vmem:[#allocation9 + $0x198] sm:$0xff]
    %v443 = vld [vmem:[#allocation9 + $0x1a0] sm:$0xff]
    %v444 = vld [vmem:[#allocation9 + $0x1a8] sm:$0xff]
    %v445 = vld [vmem:[#allocation9 + $0x1b0] sm:$0xff]
    %v446 = vld [vmem:[#allocation9 + $0x1b8] sm:$0xff]
    %v447 = vld [vmem:[#allocation9 + $0x1c0] sm:$0xff]
    %v448 = vld [vmem:[#allocation9 + $0x1c8] sm:$0xff]
    %v449 = vld [vmem:[#allocation9 + $0x1d0] sm:$0xff]
    %v450 = vld [vmem:[#allocation9 + $0x1d8] sm:$0xff]
    %v451 = vld [vmem:[#allocation9 + $0x1e0] sm:$0xff]
    %v452 = vld [vmem:[#allocation9 + $0x1e8] sm:$0xff]
    %v453 = vld [vmem:[#allocation9 + $0x1f0] sm:$0xff]
    %v454 = vld [vmem:[#allocation9 + $0x1f8] sm:$0xff]
    %v455 = vld [vmem:[#allocation9 + $0x200] sm:$0xff]
    %v456 = vld [vmem:[#allocation9 + $0x208] sm:$0xff]
    %v457 = vld [vmem:[#allocation9 + $0x210] sm:$0xff]
    %v458 = vld [vmem:[#allocation9 + $0x218] sm:$0xff]
    %v459 = vld [vmem:[#allocation9 + $0x220] sm:$0xff]
    %v460 = vld [vmem:[#allocation9 + $0x228] sm:$0xff]
    %v461 = vld [vmem:[#allocation9 + $0x230] sm:$0xff]
    %v462 = vld [vmem:[#allocation9 + $0x238] sm:$0xff]
    %v463 = vld [vmem:[#allocation9 + $0x240] sm:$0xff]
    %v464 = vld [vmem:[#allocation9 + $0x248] sm:$0xff]
    %v465 = vld [vmem:[#allocation9 + $0x250] sm:$0xff]
    %v466 = vld [vmem:[#allocation9 + $0x258] sm:$0xff]
    %v467 = vld [vmem:[#allocation9 + $0x260] sm:$0xff]
    %v468 = vld [vmem:[#allocation9 + $0x268] sm:$0xff]
    %v469 = vld [vmem:[#allocation9 + $0x270] sm:$0xff]
    %v470 = vld [vmem:[#allocation9 + $0x278] sm:$0xff]
    %v471 = vld [vmem:[#allocation9 + $0x280] sm:$0xff]
    %v472 = vld [vmem:[#allocation9 + $0x288] sm:$0xff]
    %v473 = vld [vmem:[#allocation9 + $0x290] sm:$0xff]
    %v474 = vld [vmem:[#allocation9 + $0x298] sm:$0xff]
    %v475 = vld [vmem:[#allocation9 + $0x2a0] sm:$0xff]
    %v476 = vld [vmem:[#allocation9 + $0x2a8] sm:$0xff]
    %v477 = vld [vmem:[#allocation9 + $0x2b0] sm:$0xff]
    %v478 = vld [vmem:[#allocation9 + $0x2b8] sm:$0xff]
    %v479 = vld [vmem:[#allocation9 + $0x2c0] sm:$0xff]
    %v480 = vld [vmem:[#allocation9 + $0x2c8] sm:$0xff]
    %v481 = vld [vmem:[#allocation9 + $0x2d0] sm:$0xff]
    %v482 = vld [vmem:[#allocation9 + $0x2d8] sm:$0xff]
    %v483 = vld [vmem:[#allocation9 + $0x2e0] sm:$0xff]
    %v484 = vld [vmem:[#allocation9 + $0x2e8] sm:$0xff]
    %v485 = vld [vmem:[#allocation9 + $0x2f0] sm:$0xff]
    %v486 = vld [vmem:[#allocation9 + $0x2f8] sm:$0xff]
    %v487 = vld [vmem:[#allocation9 + $0x300] sm:$0xff]
    %v488 = vld [vmem:[#allocation9 + $0x308] sm:$0xff]
    %v489 = vld [vmem:[#allocation9 + $0x310] sm:$0xff]
    %v490 = vld [vmem:[#allocation9 + $0x318] sm:$0xff]
    %v491 = vld [vmem:[#allocation9 + $0x320] sm:$0xff]
    %v492 = vld [vmem:[#allocation9 + $0x328] sm:$0xff]
    %v493 = vld [vmem:[#allocation9 + $0x330] sm:$0xff]
    %v494 = vld [vmem:[#allocation9 + $0x338] sm:$0xff]
    %v495 = vld [vmem:[#allocation9 + $0x340] sm:$0xff]
    %v496 = vld [vmem:[#allocation9 + $0x348] sm:$0xff]
    %v497 = vld [vmem:[#allocation9 + $0x350] sm:$0xff]
    %v498 = vld [vmem:[#allocation9 + $0x358] sm:$0xff]
    %v499 = vld [vmem:[#allocation9 + $0x360] sm:$0xff]
    %v500 = vld [vmem:[#allocation9 + $0x368] sm:$0xff]
    %v501 = vld [vmem:[#allocation9 + $0x370] sm:$0xff]
    %v502 = vld [vmem:[#allocation9 + $0x378] sm:$0xff]
    %v503 = vld [vmem:[#allocation9 + $0x380] sm:$0xff]
    %v504 = vld [vmem:[#allocation9 + $0x388] sm:$0xff]
    %v505 = vld [vmem:[#allocation9 + $0x390] sm:$0xff]
    %v506 = vld [vmem:[#allocation9 + $0x398] sm:$0xff]
    %v507 = vld [vmem:[#allocation9 + $0x3a0] sm:$0xff]
    %v508 = vld [vmem:[#allocation9 + $0x3a8] sm:$0xff]
    %v509 = vld [vmem:[#allocation9 + $0x3b0] sm:$0xff]
    %v510 = vld [vmem:[#allocation9 + $0x3b8] sm:$0xff]
    %v511 = vld [vmem:[#allocation9 + $0x3c0] sm:$0xff]
    %v512 = vld [vmem:[#allocation9 + $0x3c8] sm:$0xff]
    %v513 = vld [vmem:[#allocation9 + $0x3d0] sm:$0xff]
    %v514 = vld [vmem:[#allocation9 + $0x3d8] sm:$0xff]
    %v515 = vld [vmem:[#allocation9 + $0x3e0] sm:$0xff]
    %v516 = vld [vmem:[#allocation9 + $0x3e8] sm:$0xff]
    %v517 = vld [vmem:[#allocation9 + $0x3f0] sm:$0xff]
    %v518 = vld [vmem:[#allocation9 + $0x3f8] sm:$0xff]
    %519 = vmatpush.msra.mxu0 %v421
    %520 = vmatpush.msra.mxu0 %v419
    %521 = vmatpush.msra.mxu0 %v417
    %522 = vmatpush.msra.mxu0 %v415
    %523 = vmatpush.msra.mxu0 %v413
    %524 = vmatpush.msra.mxu0 %v411
    %525 = vmatpush.msra.mxu0 %v409
    %526 = vmatpush.msra.mxu0 %v407
    %527 = vmatpush.msra.mxu0 %v405
    %528 = vmatpush.msra.mxu0 %v403
    %529 = vmatpush.msra.mxu0 %v401
    %530 = vmatpush.msra.mxu0 %v399
    %531 = vmatpush.msra.mxu0 %v397
    %532 = vmatpush.msra.mxu0 %v395
    %533 = vmatpush.msra.mxu0 %v393
    %534 = vmatpush.msra.mxu0 %v391
    %535 = vmatmul.f32.gmra.mxu0 %v91
    %v536 = vpop.f32.mrf.mxu0
    %v537 = vadd.f32 0.0, %v536
    %538 = vdwg.mxu0
    %539 = vmatpush.msra.mxu0 %v453
    %540 = vmatpush.msra.mxu0 %v451
    %541 = vmatpush.msra.mxu0 %v449
    %542 = vmatpush.msra.mxu0 %v447
    %543 = vmatpush.msra.mxu0 %v445
    %544 = vmatpush.msra.mxu0 %v443
    %545 = vmatpush.msra.mxu0 %v441
    %546 = vmatpush.msra.mxu0 %v439
    %547 = vmatpush.msra.mxu0 %v437
    %548 = vmatpush.msra.mxu0 %v435
    %549 = vmatpush.msra.mxu0 %v433
    %550 = vmatpush.msra.mxu0 %v431
    %551 = vmatpush.msra.mxu0 %v429
    %552 = vmatpush.msra.mxu0 %v427
    %553 = vmatpush.msra.mxu0 %v425
    %554 = vmatpush.msra.mxu0 %v423
    %555 = vmatmul.f32.gmra.mxu0 %v92
    %v556 = vpop.f32.mrf.mxu0
    %v557 = vadd.f32 %v537, %v556
    %558 = vdwg.mxu0
    %559 = vmatpush.msra.mxu0 %v485
    %560 = vmatpush.msra.mxu0 %v483
    %561 = vmatpush.msra.mxu0 %v481
    %562 = vmatpush.msra.mxu0 %v479
    %563 = vmatpush.msra.mxu0 %v477
    %564 = vmatpush.msra.mxu0 %v475
    %565 = vmatpush.msra.mxu0 %v473
    %566 = vmatpush.msra.mxu0 %v471
    %567 = vmatpush.msra.mxu0 %v469
    %568 = vmatpush.msra.mxu0 %v467
    %569 = vmatpush.msra.mxu0 %v465
    %570 = vmatpush.msra.mxu0 %v463
    %571 = vmatpush.msra.mxu0 %v461
    %572 = vmatpush.msra.mxu0 %v459
    %573 = vmatpush.msra.mxu0 %v457
    %574 = vmatpush.msra.mxu0 %v455
    %575 = vmatmul.f32.gmra.mxu0 %v93
    %v576 = vpop.f32.mrf.mxu0
    %v577 = vadd.f32 %v557, %v576
    %578 = vdwg.mxu0
    %579 = vmatpush.msra.mxu0 %v517
    %580 = vmatpush.msra.mxu0 %v515
    %581 = vmatpush.msra.mxu0 %v513
    %582 = vmatpush.msra.mxu0 %v511
    %583 = vmatpush.msra.mxu0 %v509
    %584 = vmatpush.msra.mxu0 %v507
    %585 = vmatpush.msra.mxu0 %v505
    %586 = vmatpush.msra.mxu0 %v503
    %587 = vmatpush.msra.mxu0 %v501
    %588 = vmatpush.msra.mxu0 %v499
    %589 = vmatpush.msra.mxu0 %v497
    %590 = vmatpush.msra.mxu0 %v495
    %591 = vmatpush.msra.mxu0 %v493
    %592 = vmatpush.msra.mxu0 %v491
    %593 = vmatpush.msra.mxu0 %v489
    %594 = vmatpush.msra.mxu0 %v487
    %595 = vmatmul.f32.gmra.mxu0 %v94
    %v596 = vpop.f32.mrf.mxu0
    %v597 = vadd.f32 %v577, %v596
    %598 = vdwg.mxu0
    %599 = vmatpush.msra.mxu0 %v422
    %600 = vmatpush.msra.mxu0 %v420
    %601 = vmatpush.msra.mxu0 %v418
    %602 = vmatpush.msra.mxu0 %v416
    %603 = vmatpush.msra.mxu0 %v414
    %604 = vmatpush.msra.mxu0 %v412
    %605 = vmatpush.msra.mxu0 %v410
    %606 = vmatpush.msra.mxu0 %v408
    %607 = vmatpush.msra.mxu0 %v406
    %608 = vmatpush.msra.mxu0 %v404
    %609 = vmatpush.msra.mxu0 %v402
    %610 = vmatpush.msra.mxu0 %v400
    %611 = vmatpush.msra.mxu0 %v398
    %612 = vmatpush.msra.mxu0 %v396
    %613 = vmatpush.msra.mxu0 %v394
    %614 = vmatpush.msra.mxu0 %v392
    %615 = vmatmul.f32.gmra.mxu0 %v91
    %v616 = vpop.f32.mrf.mxu0
    %v617 = vadd.f32 0.0, %v616
    %618 = vdwg.mxu0
    %619 = vmatpush.msra.mxu0 %v454
    %620 = vmatpush.msra.mxu0 %v452
    %621 = vmatpush.msra.mxu0 %v450
    %622 = vmatpush.msra.mxu0 %v448
    %623 = vmatpush.msra.mxu0 %v446
    %624 = vmatpush.msra.mxu0 %v444
    %625 = vmatpush.msra.mxu0 %v442
    %626 = vmatpush.msra.mxu0 %v440
    %627 = vmatpush.msra.mxu0 %v438
    %628 = vmatpush.msra.mxu0 %v436
    %629 = vmatpush.msra.mxu0 %v434
    %630 = vmatpush.msra.mxu0 %v432
    %631 = vmatpush.msra.mxu0 %v430
    %632 = vmatpush.msra.mxu0 %v428
    %633 = vmatpush.msra.mxu0 %v426
    %634 = vmatpush.msra.mxu0 %v424
    %635 = vmatmul.f32.gmra.mxu0 %v92
    %v636 = vpop.f32.mrf.mxu0
    %v637 = vadd.f32 %v617, %v636
    %638 = vdwg.mxu0
    %639 = vmatpush.msra.mxu0 %v486
    %640 = vmatpush.msra.mxu0 %v484
    %641 = vmatpush.msra.mxu0 %v482
    %642 = vmatpush.msra.mxu0 %v480
    %643 = vmatpush.msra.mxu0 %v478
    %644 = vmatpush.msra.mxu0 %v476
    %645 = vmatpush.msra.mxu0 %v474
    %646 = vmatpush.msra.mxu0 %v472
    %647 = vmatpush.msra.mxu0 %v470
    %648 = vmatpush.msra.mxu0 %v468
    %649 = vmatpush.msra.mxu0 %v466
    %650 = vmatpush.msra.mxu0 %v464
    %651 = vmatpush.msra.mxu0 %v462
    %652 = vmatpush.msra.mxu0 %v460
    %653 = vmatpush.msra.mxu0 %v458
    %654 = vmatpush.msra.mxu0 %v456
    %655 = vmatmul.f32.gmra.mxu0 %v93
    %v656 = vpop.f32.mrf.mxu0
    %v657 = vadd.f32 %v637, %v656
    %658 = vdwg.mxu0
    %659 = vmatpush.msra.mxu0 %v518
    %660 = vmatpush.msra.mxu0 %v516
    %661 = vmatpush.msra.mxu0 %v514
    %662 = vmatpush.msra.mxu0 %v512
    %663 = vmatpush.msra.mxu0 %v510
    %664 = vmatpush.msra.mxu0 %v508
    %665 = vmatpush.msra.mxu0 %v506
    %666 = vmatpush.msra.mxu0 %v504
    %667 = vmatpush.msra.mxu0 %v502
    %668 = vmatpush.msra.mxu0 %v500
    %669 = vmatpush.msra.mxu0 %v498
    %670 = vmatpush.msra.mxu0 %v496
    %671 = vmatpush.msra.mxu0 %v494
    %672 = vmatpush.msra.mxu0 %v492
    %673 = vmatpush.msra.mxu0 %v490
    %674 = vmatpush.msra.mxu0 %v488
    %675 = vmatmul.f32.gmra.mxu0 %v94
    %v676 = vpop.f32.mrf.mxu0
    %v677 = vadd.f32 %v657, %v676
    %678 = vdwg.mxu0
    %v679 = vadd.f32 %v389, %v597
    %v680 = vadd.f32 %v390, %v677
    %681 = vst [vmem:[#allocation3] sm:$0xff] %v679
    %682 = vst [vmem:[#allocation3 + $0x8] sm:$0xff] %v680
    // Predicated region
    $region42: #{_forward_impl.1} parent=1 // pred_check
      %p683 = pneg %p69
    $region43: #{_forward_impl.1} parent=1 // pred_check_branch
      %685 = sbr.rel (%p683) target = $region45
    $region44: #{_forward_impl.1} parent=1 // pred_region
      %v686 = vld [vmem:[#allocation2] sm:$0xff]
      %v687 = vld [vmem:[#allocation2 + $0x8] sm:$0xff]
      %v688 = vld [vmem:[#allocation3] sm:$0xff]
      %v689 = vld [vmem:[#allocation3 + $0x8] sm:$0xff]
      %v690 = vld [vmem:[%s5] sm:$0x3]
      %v692 = vperm.slane %v690, 0
      %v693 = vperm.slane %v690, 1
      %v696 = vmul.f32 %v688, %v692
      %v697 = vmul.f32 %v689, %v693
      %v698 = vadd.f32 %v686, %v696
      %v699 = vadd.f32 %v687, %v697
      %v700 = vld [vmem:[%s4] sm:$0x3]
      %v702 = vperm.slane %v700, 0
      %v703 = vperm.slane %v700, 1
      %v706 = vadd.f32 %v698, %v702
      %v707 = vadd.f32 %v699, %v703
      %708 = vst [vmem:[#allocation10] sm:$0xff] %v706
      %709 = vst [vmem:[#allocation10 + $0x8] sm:$0xff] %v707
    $region45: #{_forward_impl.1} parent=1 // pred_fallthru
      _
    // Predicated region
    $region46: #{_forward_impl.1} parent=1 // pred_check
      _
    $region47: #{_forward_impl.1} parent=1 // pred_check_branch
      %711 = sbr.rel (0) target = $region49
    $region48: #{_forward_impl.1} parent=1 // pred_region
      %713 = vsyncadd [#allocation6], 0
      %s715 = sshll.u32 [#allocation10], 4
      %s716 = int_to_ptr.vmem [resolvable:$true] %s715
      %s717 = sshll.u32 %s6, 4
      %s718 = int_to_ptr.hbm [resolvable:$true] %s717
      %720 = dma.vmem_to_hbm [thread:$0]  %s716, 256, %s718, [#allocation6]
    $region49: #{_forward_impl.1} parent=1 // pred_fallthru
      _
    // Predicated region
    $region50: #{_forward_impl.1} parent=1 // pred_check
      _
    $region51: #{_forward_impl.1} parent=1 // pred_check_branch
      %722 = sbr.rel (0) target = $region53
    $region52: #{_forward_impl.1} parent=1 // pred_region
      %724 = dma.done [#allocation6], 256
    $region53: #{_forward_impl.1} parent=1 // pred_fallthru
      _
    %725 = vsyncpa [#allocation5], 1
    %726 = vsyncpa [#allocation8], 1
    %727 = vsyncpa [#allocation6], 1

</llo_original>
